<compile_context>
chip_gen: v5e
topology: v5e:2x2
jax: 0.10.0
libtpu: 0.0.40
codegen_flags: <defaults>
</compile_context>

<pallas_src>
import jax
import jax.numpy as jnp
from jax.experimental import pallas as pl
from jax.experimental.pallas import tpu as pltpu


def _round_up(x, m):
    return (x + m - 1) // m * m


# ----------------------------------------------------------------------------- kernel
def encoder_lstm_kernel(toks_ref,    # SMEM (T,) int32        scalar-prefetched token ids
                        emb_ref,     # VMEM (V, 1, E_p) bf16  embedding table (resident)
                        wx_ref,      # VMEM (E_p, 4*H_p) bf16 W_ih^T, gate-slab layout
                        wh_ref,      # VMEM (H_p, 4*H_p) f32  W_hh^T, gate-slab layout
                        bias_ref,    # VMEM (1, 4*H_p) f32    b_ih + b_hh (zero in pad lanes)
                        h0_ref,      # VMEM (1, H_p) f32      initial hidden state
                        c0_ref,      # VMEM (1, H_p) f32      initial cell state
                        out_ref,     # VMEM (T, H_p) f32      per-step h_t (written once to HBM)
                        h_out_ref,   # VMEM (1, H_p) f32      final hidden state
                        c_out_ref,   # VMEM (1, H_p) f32      final cell state
                        x_sc,        # VMEM (T, E_p) f32      gathered embeddings ("embedded.float()")
                        gx_sc,       # VMEM (T, 4*H_p) f32    precomputed input-side gates
                        h_sc,        # VMEM (1, H_p) f32      hidden carry
                        c_sc):       # VMEM (1, H_p) f32      cell carry
    T, H_p = out_ref.shape

    # ---- Phase 1: gather all T embedding rows into VMEM (off the serial critical path).
    @pl.loop(0, T)
    def _(t):
        x_sc[pl.ds(t, 1), :] = emb_ref[toks_ref[t]].astype(jnp.float32)

    # ---- Phase 2: batched input projection for ALL timesteps in one M=T MXU matmul.
    gx_sc[...] = jnp.dot(x_sc[...].astype(jnp.bfloat16), wx_ref[...],
                         preferred_element_type=jnp.float32) + bias_ref[...]

    # ---- Phase 3: serial recurrence; only h @ W_hh^T (K=H_p) on the data-dependent path.
    h_sc[...] = h0_ref[...]
    c_sc[...] = c0_ref[...]

    @pl.loop(0, T)
    def _(t):
        h = h_sc[...]                                   # (1, H_p) f32
        c = c_sc[...]                                   # (1, H_p) f32
        gates = gx_sc[pl.ds(t, 1), :] + jnp.dot(        # f32 recurrent matmul (no bf16 drift)
            h, wh_ref[...], preferred_element_type=jnp.float32)

        # PyTorch gate order [i, f, g, o]; each gate in its own 128-wide lane slab.
        i_g = jax.nn.sigmoid(gates[:, 0 * H_p:1 * H_p])
        f_g = jax.nn.sigmoid(gates[:, 1 * H_p:2 * H_p])
        g_g = jnp.tanh(gates[:, 2 * H_p:3 * H_p])
        o_g = jax.nn.sigmoid(gates[:, 3 * H_p:4 * H_p])

        c_new = f_g * c + i_g * g_g
        h_new = o_g * jnp.tanh(c_new)

        h_sc[...] = h_new
        c_sc[...] = c_new
        out_ref[pl.ds(t, 1), :] = h_new                 # VMEM write; HBM DMA happens once at end

    h_out_ref[...] = h_sc[...]
    c_out_ref[...] = c_sc[...]


# ----------------------------------------------------------------------------- wrappers
def encoder_rnn_run(tokens, hidden, params):
    """Run the encoder over a whole token sequence in one kernel launch.

    tokens: (T,) int32 token ids.
    hidden: (h0, c0) each (1, 1, H) float.
    returns: outputs (T, 1, H), (h_T (1,1,H), c_T (1,1,H)).
    """
    tokens = jnp.asarray(tokens, jnp.int32).reshape(-1)
    T = int(tokens.shape[0])
    H, E_p, H_p = params["H"], params["E_p"], params["H_p"]
    V = params["emb"].shape[0]

    h0, c0 = hidden
    h0p = jnp.zeros((1, H_p), jnp.float32).at[:, :H].set(h0.reshape(1, H).astype(jnp.float32))
    c0p = jnp.zeros((1, H_p), jnp.float32).at[:, :H].set(c0.reshape(1, H).astype(jnp.float32))

    grid_spec = pltpu.PrefetchScalarGridSpec(
        num_scalar_prefetch=1,          # token ids -> SMEM, read inside the kernel
        grid=(1,),                      # whole sequence handled in a single grid step
        in_specs=[
            pl.BlockSpec((V, 1, E_p), lambda i, toks: (0, 0, 0)),      # resident bf16 emb table
            pl.BlockSpec((E_p, 4 * H_p), lambda i, toks: (0, 0)),      # W_ih^T (bf16)
            pl.BlockSpec((H_p, 4 * H_p), lambda i, toks: (0, 0)),      # W_hh^T (f32)
            pl.BlockSpec((1, 4 * H_p), lambda i, toks: (0, 0)),        # fused bias
            pl.BlockSpec((1, H_p), lambda i, toks: (0, 0)),            # h0
            pl.BlockSpec((1, H_p), lambda i, toks: (0, 0)),            # c0
        ],
        out_specs=[
            pl.BlockSpec((T, H_p), lambda i, toks: (0, 0)),            # all h_t (one dense store)
            pl.BlockSpec((1, H_p), lambda i, toks: (0, 0)),            # final h
            pl.BlockSpec((1, H_p), lambda i, toks: (0, 0)),            # final c
        ],
        scratch_shapes=[
            pltpu.VMEM((T, E_p), jnp.float32),       # gathered embeddings
            pltpu.VMEM((T, 4 * H_p), jnp.float32),   # precomputed input-side gates
            pltpu.VMEM((1, H_p), jnp.float32),       # h carry
            pltpu.VMEM((1, H_p), jnp.float32),       # c carry
        ],
    )

    outs_p, h_T_p, c_T_p = pl.pallas_call(
        encoder_lstm_kernel,
        grid_spec=grid_spec,
        out_shape=[
            jax.ShapeDtypeStruct((T, H_p), jnp.float32),
            jax.ShapeDtypeStruct((1, H_p), jnp.float32),
            jax.ShapeDtypeStruct((1, H_p), jnp.float32),
        ],
        compiler_params=pltpu.CompilerParams(
            dimension_semantics=("arbitrary",)),      # serial recurrence over time
    )(tokens, params["emb"], params["w_x"], params["w_h"], params["bias"], h0p, c0p)

    outputs = outs_p[:, :H].reshape(T, 1, H)          # strip lane padding
    h_T = h_T_p[:, :H].reshape(1, 1, H)
    c_T = c_T_p[:, :H].reshape(1, 1, H)
    return outputs, (h_T, c_T)


def encoder_rnn_forward(token_id, hidden, params):
    """Exact analogue of EncoderRNN.forward(input, hidden): one token, one step."""
    tok = jnp.asarray(token_id, jnp.int32).reshape(1)
    outputs, (h_T, c_T) = encoder_rnn_run(tok, hidden, params)
    return outputs.reshape(1, 1, -1), (h_T, c_T)


def init_hidden(hidden_size):
    return (jnp.zeros((1, 1, hidden_size), jnp.float32),
            jnp.zeros((1, 1, hidden_size), jnp.float32))


# ----------------------------------------------------------------------------- params
def init_raw_params(key, vocab_size, embedding_dim, hidden_size):
    k_emb, k_wih, k_whh, k_bih, k_bhh = jax.random.split(key, 5)
    scale = hidden_size ** -0.5
    emb = jax.random.normal(k_emb, (vocab_size, embedding_dim), jnp.float32) * 0.6
    w_ih = jax.random.uniform(k_wih, (4 * hidden_size, embedding_dim), jnp.float32, -scale, scale)
    w_hh = jax.random.uniform(k_whh, (4 * hidden_size, hidden_size), jnp.float32, -scale, scale)
    b_ih = jax.random.uniform(k_bih, (4 * hidden_size,), jnp.float32, -scale, scale)
    b_hh = jax.random.uniform(k_bhh, (4 * hidden_size,), jnp.float32, -scale, scale)
    return emb, w_ih, w_hh, b_ih, b_hh


def prepare_params(emb, w_ih, w_hh, b_ih, b_hh):
    """Pad to lane-aligned shapes and build the kernel-layout parameters."""
    V, E = emb.shape
    H = w_hh.shape[1]
    E_p = _round_up(E, 128)
    H_p = _round_up(H, 128)

    # Embedding as (V, 1, E_p) bf16: dynamic lookups index the leading (untiled) axis,
    # last-two block dims equal the full array dims.
    emb_p = jnp.zeros((V, 1, E_p), jnp.float32).at[:, 0, :E].set(emb).astype(jnp.bfloat16)

    # W_ih^T (E_p, 4*H_p) and W_hh^T (H_p, 4*H_p), each gate in its own 128-aligned lane
    # slab (PyTorch order i, f, g, o).  Padding lanes have zero weights and zero bias, so
    # padded h/c stay exactly zero through the recurrence.
    W_x = jnp.zeros((E_p, 4 * H_p), jnp.float32)
    W_h = jnp.zeros((H_p, 4 * H_p), jnp.float32)
    b = jnp.zeros((1, 4 * H_p), jnp.float32)
    bias_sum = b_ih + b_hh
    for g in range(4):
        W_x = W_x.at[:E, g * H_p:g * H_p + H].set(w_ih[g * H:(g + 1) * H, :].T)
        W_h = W_h.at[:H, g * H_p:g * H_p + H].set(w_hh[g * H:(g + 1) * H, :].T)
        b = b.at[0, g * H_p:g * H_p + H].set(bias_sum[g * H:(g + 1) * H])

    return {
        "emb": emb_p,                      # (V, 1, E_p) bf16  VMEM-resident table
        "w_x": W_x.astype(jnp.bfloat16),   # (E_p, 4*H_p) bf16 (batched input projection)
        "w_h": W_h,                        # (H_p, 4*H_p) f32  (recurrent path stays f32)
        "bias": b,                         # (1, 4*H_p) f32
        "E": E, "H": H, "E_p": E_p, "H_p": H_p,
    }


# ----------------------------------------------------------------------------- reference
def reference_lstm(tokens, h0, c0, emb, w_ih, w_hh, b_ih, b_hh):
    """Pure-JAX f32 reference (PyTorch LSTM semantics) for a tolerance check."""
    H = h0.shape[0]

    def step(carry, tok):
        h, c = carry
        x = emb[tok]
        gates = w_ih @ x + w_hh @ h + b_ih + b_hh
        i = jax.nn.sigmoid(gates[0:H])
        f = jax.nn.sigmoid(gates[H:2 * H])
        g = jnp.tanh(gates[2 * H:3 * H])
        o = jax.nn.sigmoid(gates[3 * H:4 * H])
        c_new = f * c + i * g
        h_new = o * jnp.tanh(c_new)
        return (h_new, c_new), h_new

    (h_T, c_T), outs = jax.lax.scan(step, (h0, c0), tokens)
    return outs, h_T, c_T


# ----------------------------------------------------------------------------- main
if __name__ == "__main__":
    VOCAB, EMB, HID = 100, 50, 50      # embedding_dim == hidden_dim == 50, as in the module
    T = 8

    key = jax.random.PRNGKey(0)
    emb, w_ih, w_hh, b_ih, b_hh = init_raw_params(key, VOCAB, EMB, HID)
    params = prepare_params(emb, w_ih, w_hh, b_ih, b_hh)

    tokens = jax.random.randint(jax.random.PRNGKey(1), (T,), 0, VOCAB, dtype=jnp.int32)
    hidden = init_hidden(HID)

    # Whole-sequence encode in a single kernel launch (time loop inside the kernel).
    outputs, (h_T, c_T) = encoder_rnn_run(tokens, hidden, params)
    jax.block_until_ready((outputs, h_T, c_T))
    assert outputs.shape == (T, 1, HID)
    assert h_T.shape == (1, 1, HID) and c_T.shape == (1, 1, HID)

    # Single-step call matching EncoderRNN.forward(input, hidden).
    out1, (h1, c1) = encoder_rnn_forward(tokens[0], hidden, params)
    jax.block_until_ready((out1, h1, c1))
    assert out1.shape == (1, 1, HID) and h1.shape == (1, 1, HID) and c1.shape == (1, 1, HID)

    # Numerical check against the f32 reference (bf16 embeddings / W_ih -> loose tolerance).
    ref_outs, ref_h, ref_c = reference_lstm(tokens,
                                            jnp.zeros(HID, jnp.float32),
                                            jnp.zeros(HID, jnp.float32),
                                            emb, w_ih, w_hh, b_ih, b_hh)
    assert jnp.max(jnp.abs(outputs[:, 0, :] - ref_outs)) < 5e-2
    assert jnp.max(jnp.abs(h_T.reshape(-1) - ref_h)) < 5e-2
    assert jnp.max(jnp.abs(c_T.reshape(-1) - ref_c)) < 5e-2
    assert jnp.max(jnp.abs(out1.reshape(-1) - ref_outs[0])) < 5e-2

    print("KERNEL_OK")
</pallas_src>

<mosaic_0001>
module attributes {stable_mosaic.version = 11 : i64} {
  func.func @encoder_lstm_kernel(%arg0: i32, %arg1: memref<8xi32, #tpu.memory_space<smem>>, %arg2: memref<100x1x128xbf16, #tpu.memory_space<vmem>>, %arg3: memref<128x512xbf16, #tpu.memory_space<vmem>>, %arg4: memref<128x512xf32, #tpu.memory_space<vmem>>, %arg5: memref<1x512xf32, #tpu.memory_space<vmem>>, %arg6: memref<1x128xf32, #tpu.memory_space<vmem>>, %arg7: memref<1x128xf32, #tpu.memory_space<vmem>>, %arg8: memref<8x128xf32, #tpu.memory_space<vmem>>, %arg9: memref<1x128xf32, #tpu.memory_space<vmem>>, %arg10: memref<1x128xf32, #tpu.memory_space<vmem>>, %arg11: memref<8x128xf32, #tpu.memory_space<vmem>>, %arg12: memref<8x512xf32, #tpu.memory_space<vmem>>, %arg13: memref<1x128xf32, #tpu.memory_space<vmem>>, %arg14: memref<1x128xf32, #tpu.memory_space<vmem>>) attributes {dimension_semantics = [#tpu.dimension_semantics<arbitrary>], iteration_bounds = array<i64: 1>, scalar_prefetch = 1 : i64, scratch_operands = 4 : i64, tpu.core_type = #tpu.core_type<tc>, window_params = [{pipeline_mode = #tpu.pipeline_mode<synchronous>, transform_indices = @transform_0, window_bounds = array<i64: 100, 1, 128>}, {pipeline_mode = #tpu.pipeline_mode<synchronous>, transform_indices = @transform_1, window_bounds = array<i64: 128, 512>}, {pipeline_mode = #tpu.pipeline_mode<synchronous>, transform_indices = @transform_2, window_bounds = array<i64: 128, 512>}, {pipeline_mode = #tpu.pipeline_mode<synchronous>, transform_indices = @transform_3, window_bounds = array<i64: 1, 512>}, {pipeline_mode = #tpu.pipeline_mode<synchronous>, transform_indices = @transform_4, window_bounds = array<i64: 1, 128>}, {pipeline_mode = #tpu.pipeline_mode<synchronous>, transform_indices = @transform_5, window_bounds = array<i64: 1, 128>}, {pipeline_mode = #tpu.pipeline_mode<synchronous>, transform_indices = @transform_6, window_bounds = array<i64: 8, 128>}, {pipeline_mode = #tpu.pipeline_mode<synchronous>, transform_indices = @transform_7, window_bounds = array<i64: 1, 128>}, {pipeline_mode = #tpu.pipeline_mode<synchronous>, transform_indices = @transform_8, window_bounds = array<i64: 1, 128>}]} {
    %c0_i32 = arith.constant 0 : i32
    %c8_i32 = arith.constant 8 : i32
    %0 = arith.addi %c0_i32, %c8_i32 : i32
    %c1_i32 = arith.constant 1 : i32
    scf.for %arg15 = %c0_i32 to %0 step %c1_i32  : i32 {
      %c1_i32_28 = arith.constant 1 : i32
      %18 = arith.muli %arg15, %c1_i32_28 : i32
      %c0_i32_29 = arith.constant 0 : i32
      %19 = arith.addi %c0_i32_29, %18 : i32
      %20 = arith.index_cast %19 : i32 to index
      %21 = memref.load %arg1[%20] : memref<8xi32, #tpu.memory_space<smem>>
      %22 = arith.index_cast %21 : i32 to index
      %c0_30 = arith.constant 0 : index
      %c0_31 = arith.constant 0 : index
      %23 = vector.load %arg2[%22, %c0_30, %c0_31] : memref<100x1x128xbf16, #tpu.memory_space<vmem>>, vector<1x1x128xbf16>
      %24 = vector.shape_cast %23 : vector<1x1x128xbf16> to vector<1x128xbf16>
      %25 = arith.extf %24 : vector<1x128xbf16> to vector<1x128xf32>
      %26 = arith.index_cast %19 : i32 to index
      %c0_32 = arith.constant 0 : index
      %27 = vector.load %arg11[%26, %c0_32] : memref<8x128xf32, #tpu.memory_space<vmem>>, vector<1x128xf32>
      tpu.vector_store %arg11[%26, %c0_32], %25 {strides = array<i32>} : memref<8x128xf32, #tpu.memory_space<vmem>>, vector<1x128xf32>,
    }
    %c8_i32_0 = arith.constant 8 : i32
    %c0 = arith.constant 0 : index
    %c0_1 = arith.constant 0 : index
    %1 = vector.load %arg11[%c0, %c0_1] : memref<8x128xf32, #tpu.memory_space<vmem>>, vector<8x128xf32>
    %2 = arith.truncf %1 : vector<8x128xf32> to vector<8x128xbf16>
    %c0_2 = arith.constant 0 : index
    %c0_3 = arith.constant 0 : index
    %3 = vector.load %arg3[%c0_2, %c0_3] : memref<128x512xbf16, #tpu.memory_space<vmem>>, vector<128x512xbf16>
    %cst = arith.constant dense<0.000000e+00> : vector<8x512xf32>
    %4 = tpu.matmul %2, %3, %cst {dimension_numbers = #tpu.dot_dimension_numbers<[1], [0], [0], [1], [0, 0, 1, 1], [], []>} : vector<8x128xbf16>, vector<128x512xbf16>, vector<8x512xf32> -> vector<8x512xf32>
    %c0_4 = arith.constant 0 : index
    %c0_5 = arith.constant 0 : index
    %5 = vector.load %arg5[%c0_4, %c0_5] : memref<1x512xf32, #tpu.memory_space<vmem>>, vector<1x512xf32>
    %6 = vector.broadcast %5 : vector<1x512xf32> to vector<8x512xf32>
    %7 = arith.addf %4, %6 : vector<8x512xf32>
    %c0_6 = arith.constant 0 : index
    %c0_7 = arith.constant 0 : index
    %8 = vector.load %arg12[%c0_6, %c0_7] : memref<8x512xf32, #tpu.memory_space<vmem>>, vector<8x512xf32>
    tpu.vector_store %arg12[%c0_6, %c0_7], %7 {strides = array<i32>} : memref<8x512xf32, #tpu.memory_space<vmem>>, vector<8x512xf32>,
    %c0_8 = arith.constant 0 : index
    %c0_9 = arith.constant 0 : index
    %9 = vector.load %arg6[%c0_8, %c0_9] : memref<1x128xf32, #tpu.memory_space<vmem>>, vector<1x128xf32>
    %c0_10 = arith.constant 0 : index
    %c0_11 = arith.constant 0 : index
    %10 = vector.load %arg13[%c0_10, %c0_11] : memref<1x128xf32, #tpu.memory_space<vmem>>, vector<1x128xf32>
    tpu.vector_store %arg13[%c0_10, %c0_11], %9 {strides = array<i32>} : memref<1x128xf32, #tpu.memory_space<vmem>>, vector<1x128xf32>,
    %c0_12 = arith.constant 0 : index
    %c0_13 = arith.constant 0 : index
    %11 = vector.load %arg7[%c0_12, %c0_13] : memref<1x128xf32, #tpu.memory_space<vmem>>, vector<1x128xf32>
    %c0_14 = arith.constant 0 : index
    %c0_15 = arith.constant 0 : index
    %12 = vector.load %arg14[%c0_14, %c0_15] : memref<1x128xf32, #tpu.memory_space<vmem>>, vector<1x128xf32>
    tpu.vector_store %arg14[%c0_14, %c0_15], %11 {strides = array<i32>} : memref<1x128xf32, #tpu.memory_space<vmem>>, vector<1x128xf32>,
    %c0_i32_16 = arith.constant 0 : i32
    %c8_i32_17 = arith.constant 8 : i32
    %13 = arith.addi %c0_i32_16, %c8_i32_17 : i32
    %c1_i32_18 = arith.constant 1 : i32
    scf.for %arg15 = %c0_i32_16 to %13 step %c1_i32_18  : i32 {
      %c1_i32_28 = arith.constant 1 : i32
      %18 = arith.muli %arg15, %c1_i32_28 : i32
      %c0_i32_29 = arith.constant 0 : i32
      %19 = arith.addi %c0_i32_29, %18 : i32
      %c0_30 = arith.constant 0 : index
      %c0_31 = arith.constant 0 : index
      %20 = vector.load %arg13[%c0_30, %c0_31] : memref<1x128xf32, #tpu.memory_space<vmem>>, vector<1x128xf32>
      %c0_32 = arith.constant 0 : index
      %c0_33 = arith.constant 0 : index
      %21 = vector.load %arg14[%c0_32, %c0_33] : memref<1x128xf32, #tpu.memory_space<vmem>>, vector<1x128xf32>
      %22 = arith.index_cast %19 : i32 to index
      %c0_34 = arith.constant 0 : index
      %23 = vector.load %arg12[%22, %c0_34] : memref<8x512xf32, #tpu.memory_space<vmem>>, vector<1x512xf32>
      %c0_35 = arith.constant 0 : index
      %c0_36 = arith.constant 0 : index
      %24 = vector.load %arg4[%c0_35, %c0_36] : memref<128x512xf32, #tpu.memory_space<vmem>>, vector<128x512xf32>
      %cst_37 = arith.constant dense<0.000000e+00> : vector<1x512xf32>
      %25 = tpu.matmul %20, %24, %cst_37 {dimension_numbers = #tpu.dot_dimension_numbers<[1], [0], [0], [1], [0, 0, 1, 1], [], []>} : vector<1x128xf32>, vector<128x512xf32>, vector<1x512xf32> -> vector<1x512xf32>
      %26 = arith.addf %23, %25 : vector<1x512xf32>
      %27 = vector.extract_strided_slice %26 {offsets = [0, 0], sizes = [1, 128], strides = [1, 1]} : vector<1x512xf32> to vector<1x128xf32>
      %28 = arith.negf %27 : vector<1x128xf32>
      %29 = math.exp %28 : vector<1x128xf32>
      %cst_38 = arith.constant 1.000000e+00 : f32
      %30 = vector.broadcast %cst_38 : f32 to vector<1x128xf32>
      %31 = arith.addf %30, %29 : vector<1x128xf32>
      %32 = arith.divf %30, %31 : vector<1x128xf32>
      %33 = vector.extract_strided_slice %26 {offsets = [0, 128], sizes = [1, 128], strides = [1, 1]} : vector<1x512xf32> to vector<1x128xf32>
      %34 = arith.negf %33 : vector<1x128xf32>
      %35 = math.exp %34 : vector<1x128xf32>
      %cst_39 = arith.constant 1.000000e+00 : f32
      %36 = vector.broadcast %cst_39 : f32 to vector<1x128xf32>
      %37 = arith.addf %36, %35 : vector<1x128xf32>
      %38 = arith.divf %36, %37 : vector<1x128xf32>
      %39 = vector.extract_strided_slice %26 {offsets = [0, 256], sizes = [1, 128], strides = [1, 1]} : vector<1x512xf32> to vector<1x128xf32>
      %40 = math.tanh %39 : vector<1x128xf32>
      %41 = vector.extract_strided_slice %26 {offsets = [0, 384], sizes = [1, 128], strides = [1, 1]} : vector<1x512xf32> to vector<1x128xf32>
      %42 = arith.negf %41 : vector<1x128xf32>
      %43 = math.exp %42 : vector<1x128xf32>
      %cst_40 = arith.constant 1.000000e+00 : f32
      %44 = vector.broadcast %cst_40 : f32 to vector<1x128xf32>
      %45 = arith.addf %44, %43 : vector<1x128xf32>
      %46 = arith.divf %44, %45 : vector<1x128xf32>
      %47 = arith.mulf %38, %21 : vector<1x128xf32>
      %48 = arith.mulf %32, %40 : vector<1x128xf32>
      %49 = arith.addf %47, %48 : vector<1x128xf32>
      %50 = math.tanh %49 : vector<1x128xf32>
      %51 = arith.mulf %46, %50 : vector<1x128xf32>
      %c0_41 = arith.constant 0 : index
      %c0_42 = arith.constant 0 : index
      %52 = vector.load %arg13[%c0_41, %c0_42] : memref<1x128xf32, #tpu.memory_space<vmem>>, vector<1x128xf32>
      tpu.vector_store %arg13[%c0_41, %c0_42], %51 {strides = array<i32>} : memref<1x128xf32, #tpu.memory_space<vmem>>, vector<1x128xf32>,
      %c0_43 = arith.constant 0 : index
      %c0_44 = arith.constant 0 : index
      %53 = vector.load %arg14[%c0_43, %c0_44] : memref<1x128xf32, #tpu.memory_space<vmem>>, vector<1x128xf32>
      tpu.vector_store %arg14[%c0_43, %c0_44], %49 {strides = array<i32>} : memref<1x128xf32, #tpu.memory_space<vmem>>, vector<1x128xf32>,
      %54 = arith.index_cast %19 : i32 to index
      %c0_45 = arith.constant 0 : index
      %55 = vector.load %arg8[%54, %c0_45] : memref<8x128xf32, #tpu.memory_space<vmem>>, vector<1x128xf32>
      tpu.vector_store %arg8[%54, %c0_45], %51 {strides = array<i32>} : memref<8x128xf32, #tpu.memory_space<vmem>>, vector<1x128xf32>,
    }
    %c8_i32_19 = arith.constant 8 : i32
    %c0_20 = arith.constant 0 : index
    %c0_21 = arith.constant 0 : index
    %14 = vector.load %arg13[%c0_20, %c0_21] : memref<1x128xf32, #tpu.memory_space<vmem>>, vector<1x128xf32>
    %c0_22 = arith.constant 0 : index
    %c0_23 = arith.constant 0 : index
    %15 = vector.load %arg9[%c0_22, %c0_23] : memref<1x128xf32, #tpu.memory_space<vmem>>, vector<1x128xf32>
    tpu.vector_store %arg9[%c0_22, %c0_23], %14 {strides = array<i32>} : memref<1x128xf32, #tpu.memory_space<vmem>>, vector<1x128xf32>,
    %c0_24 = arith.constant 0 : index
    %c0_25 = arith.constant 0 : index
    %16 = vector.load %arg14[%c0_24, %c0_25] : memref<1x128xf32, #tpu.memory_space<vmem>>, vector<1x128xf32>
    %c0_26 = arith.constant 0 : index
    %c0_27 = arith.constant 0 : index
    %17 = vector.load %arg10[%c0_26, %c0_27] : memref<1x128xf32, #tpu.memory_space<vmem>>, vector<1x128xf32>
    tpu.vector_store %arg10[%c0_26, %c0_27], %16 {strides = array<i32>} : memref<1x128xf32, #tpu.memory_space<vmem>>, vector<1x128xf32>,
    return
  }
  func.func @transform_0(%arg0: i32, %arg1: memref<8xi32, #tpu.memory_space<smem>>) -> (i32, i32, i32) {
    %c0_i32 = arith.constant 0 : i32
    %c0_i32_0 = arith.constant 0 : i32
    %c0_i32_1 = arith.constant 0 : i32
    %c0_i32_2 = arith.constant 0 : i32
    return %c0_i32, %c0_i32_0, %c0_i32_1 : i32, i32, i32
  }
  func.func @transform_1(%arg0: i32, %arg1: memref<8xi32, #tpu.memory_space<smem>>) -> (i32, i32) {
    %c0_i32 = arith.constant 0 : i32
    %c0_i32_0 = arith.constant 0 : i32
    %c0_i32_1 = arith.constant 0 : i32
    return %c0_i32, %c0_i32_0 : i32, i32
  }
  func.func @transform_2(%arg0: i32, %arg1: memref<8xi32, #tpu.memory_space<smem>>) -> (i32, i32) {
    %c0_i32 = arith.constant 0 : i32
    %c0_i32_0 = arith.constant 0 : i32
    %c0_i32_1 = arith.constant 0 : i32
    return %c0_i32, %c0_i32_0 : i32, i32
  }
  func.func @transform_3(%arg0: i32, %arg1: memref<8xi32, #tpu.memory_space<smem>>) -> (i32, i32) {
    %c0_i32 = arith.constant 0 : i32
    %c0_i32_0 = arith.constant 0 : i32
    %c0_i32_1 = arith.constant 0 : i32
    return %c0_i32, %c0_i32_0 : i32, i32
  }
  func.func @transform_4(%arg0: i32, %arg1: memref<8xi32, #tpu.memory_space<smem>>) -> (i32, i32) {
    %c0_i32 = arith.constant 0 : i32
    %c0_i32_0 = arith.constant 0 : i32
    %c0_i32_1 = arith.constant 0 : i32
    return %c0_i32, %c0_i32_0 : i32, i32
  }
  func.func @transform_5(%arg0: i32, %arg1: memref<8xi32, #tpu.memory_space<smem>>) -> (i32, i32) {
    %c0_i32 = arith.constant 0 : i32
    %c0_i32_0 = arith.constant 0 : i32
    %c0_i32_1 = arith.constant 0 : i32
    return %c0_i32, %c0_i32_0 : i32, i32
  }
  func.func @transform_6(%arg0: i32, %arg1: memref<8xi32, #tpu.memory_space<smem>>) -> (i32, i32) {
    %c0_i32 = arith.constant 0 : i32
    %c0_i32_0 = arith.constant 0 : i32
    %c0_i32_1 = arith.constant 0 : i32
    return %c0_i32, %c0_i32_0 : i32, i32
  }
  func.func @transform_7(%arg0: i32, %arg1: memref<8xi32, #tpu.memory_space<smem>>) -> (i32, i32) {
    %c0_i32 = arith.constant 0 : i32
    %c0_i32_0 = arith.constant 0 : i32
    %c0_i32_1 = arith.constant 0 : i32
    return %c0_i32, %c0_i32_0 : i32, i32
  }
  func.func @transform_8(%arg0: i32, %arg1: memref<8xi32, #tpu.memory_space<smem>>) -> (i32, i32) {
    %c0_i32 = arith.constant 0 : i32
    %c0_i32_0 = arith.constant 0 : i32
    %c0_i32_1 = arith.constant 0 : i32
    return %c0_i32, %c0_i32_0 : i32, i32
  }
}

</mosaic_0001>

<llo_original>
// kernel: tpu_custom_call.1
$region0: #{tpu_custom_call.1}
  #allocation0 [shape = 'u32[]', space=smem, size = 0x4, offset = 0x4, fixed_abs, tag = 'smem constant byte address 0x4 - core index']
  #allocation1 [shape = 'u32[72,128]{1,0:T(1,128)}', space=vmem, size = 0x9000, scoped, tag = 'internal scratch']
  #allocation2 [shape = 'f32[8,128]{1,0:T(8,128)}', space=vmem, size = 0x1000, scoped, tag = 'scratch operand']
  #allocation3 [shape = 'f32[8,512]{1,0:T(8,128)}', space=vmem, size = 0x4000, scoped, tag = 'scratch operand']
  #allocation4 [shape = 'f32[1,128]{1,0:T(1,128)}', space=vmem, size = 0x200, scoped, tag = 'scratch operand']
  #allocation5 [shape = 'f32[1,128]{1,0:T(1,128)}', space=vmem, size = 0x200, scoped, tag = 'scratch operand']
  #allocation6 [shape = 's32[1]{0}', space=sflag, size = 0x4, scoped, tag = 'scoped memory for tpu_custom_call.1']
  #allocation7 [shape = 'u8[512]{0}', space=smem, size = 0x200, scoped, tag = 'prefetched SMEM operand 0']
  %s0 = inlined_call_operand.vmem [shape: s32[8], index: 0, kind: input, shape index: {}]
  %s1 = inlined_call_operand.vmem [shape: bf16[100,1,128], index: 1, kind: input, shape index: {}]
  %s2 = inlined_call_operand.hbm [shape: bf16[128,512], index: 2, kind: input, shape index: {}]
  %s3 = inlined_call_operand.hbm [shape: f32[128,512], index: 3, kind: input, shape index: {}]
  %s4 = inlined_call_operand.vmem [shape: f32[1,512], index: 4, kind: input, shape index: {}]
  %s5 = inlined_call_operand.vmem [shape: f32[1,128], index: 5, kind: input, shape index: {}]
  %s6 = inlined_call_operand.vmem [shape: f32[1,128], index: 6, kind: input, shape index: {}]
  %s7 = inlined_call_operand.hbm [shape: f32[8,128], index: 7, kind: output, shape index: {0}]
  %s8 = inlined_call_operand.hbm [shape: f32[1,128], index: 8, kind: output, shape index: {1}]
  %s9 = inlined_call_operand.hbm [shape: f32[1,128], index: 9, kind: output, shape index: {2}]
  %10 = xla_tuple %s7, %s8, %s9
  %s11 = sld [smem:[#allocation0]]
  $region72: #{tpu_custom_call.1} parent=0
    _
  %s13 = ssub.s32 1, %s11
  %s14 = scalar_select 0, %s13, %s11
  %s16 = sshll.u32 %s0, 4
  %s17 = int_to_ptr.vmem [resolvable:$true] %s16
  %19 = dma.vmem_to_smem %s17, 16, [#allocation7], [#allocation6]
  %21 = dma.done [#allocation6], 16
  %22 = sfence
  $region1: #{tpu_custom_call.1} parent=0
    #allocation8 [shape = 'u8[131072]{0}', space=vmem, size = 0x20000, scoped, tag = 'input window, operand 2, single buffered']
    #allocation9 [shape = 's32[1]{0}', space=sflag, size = 0x4, scoped, tag = 'scoped memory for tpu_custom_call.1']
    #allocation10 [shape = 's32[1]{0}', space=sflag, size = 0x4, scoped, tag = 'scoped memory for tpu_custom_call.1']
    #allocation11 [shape = 'u8[262144]{0}', space=vmem, size = 0x40000, scoped, tag = 'input window, operand 3, single buffered']
    #allocation12 [shape = 's32[1]{0}', space=sflag, size = 0x4, scoped, tag = 'scoped memory for tpu_custom_call.1']
    #allocation13 [shape = 'u8[4096]{0}', space=vmem, size = 0x1000, scoped, tag = 'output window, operand 0, single buffered']
    #allocation14 [shape = 'u8[512]{0}', space=vmem, size = 0x400, scoped, tag = 'output window, operand 1, single buffered']
    #allocation15 [shape = 's32[1]{0}', space=sflag, size = 0x4, scoped, tag = 'scoped memory for tpu_custom_call.1']
    #allocation16 [shape = 'u8[512]{0}', space=vmem, size = 0x400, scoped, tag = 'output window, operand 2, single buffered']
    %23 = vsyncpa [#allocation9], 0
    %24 = vsyncpa [#allocation12], 0
    %25 = vsyncpa [#allocation10], 0
    %26 = vsyncpa [#allocation15], 0
    // Predicated region
    $region2: #{tpu_custom_call.1} parent=1 // pred_check
      _
    $region3: #{tpu_custom_call.1} parent=1 // pred_check_branch
      %28 = sbr.rel (0) target = $region5
    $region4: #{tpu_custom_call.1} parent=1 // pred_region
      _
    $region5: #{tpu_custom_call.1} parent=1 // pred_fallthru
      _
    // Predicated region
    $region6: #{tpu_custom_call.1} parent=1 // pred_check
      _
    $region7: #{tpu_custom_call.1} parent=1 // pred_check_branch
      %30 = sbr.rel (0) target = $region9
    $region8: #{tpu_custom_call.1} parent=1 // pred_region
      %32 = vsyncadd [#allocation9], 0
      %s33 = sshll.u32 %s2, 4
      %s34 = int_to_ptr.hbm [resolvable:$true] %s33
      %s35 = sshll.u32 [#allocation8], 4
      %s36 = int_to_ptr.vmem [resolvable:$true] %s35
      %41 = dma.hbm_to_vmem [thread:$0]  %s34, 4096, %s36, [#allocation9], 256, 256, 16
    $region9: #{tpu_custom_call.1} parent=1 // pred_fallthru
      _
    // Predicated region
    $region10: #{tpu_custom_call.1} parent=1 // pred_check
      _
    $region11: #{tpu_custom_call.1} parent=1 // pred_check_branch
      %43 = sbr.rel (0) target = $region13
    $region12: #{tpu_custom_call.1} parent=1 // pred_region
      %45 = vsyncadd [#allocation12], 0
      %s46 = sshll.u32 %s3, 4
      %s47 = int_to_ptr.hbm [resolvable:$true] %s46
      %s48 = sshll.u32 [#allocation11], 4
      %s49 = int_to_ptr.vmem [resolvable:$true] %s48
      %54 = dma.hbm_to_vmem [thread:$0]  %s47, 8192, %s49, [#allocation12], 512, 512, 32
    $region13: #{tpu_custom_call.1} parent=1 // pred_fallthru
      _
    // Predicated region
    $region14: #{tpu_custom_call.1} parent=1 // pred_check
      _
    $region15: #{tpu_custom_call.1} parent=1 // pred_check_branch
      %56 = sbr.rel (0) target = $region17
    $region16: #{tpu_custom_call.1} parent=1 // pred_region
      _
    $region17: #{tpu_custom_call.1} parent=1 // pred_fallthru
      _
    // Predicated region
    $region18: #{tpu_custom_call.1} parent=1 // pred_check
      _
    $region19: #{tpu_custom_call.1} parent=1 // pred_check_branch
      %58 = sbr.rel (0) target = $region21
    $region20: #{tpu_custom_call.1} parent=1 // pred_region
      _
    $region21: #{tpu_custom_call.1} parent=1 // pred_fallthru
      _
    // Predicated region
    $region22: #{tpu_custom_call.1} parent=1 // pred_check
      _
    $region23: #{tpu_custom_call.1} parent=1 // pred_check_branch
      %60 = sbr.rel (0) target = $region25
    $region24: #{tpu_custom_call.1} parent=1 // pred_region
      _
    $region25: #{tpu_custom_call.1} parent=1 // pred_fallthru
      _
    // Predicated region
    $region26: #{tpu_custom_call.1} parent=1 // pred_check
      _
    $region27: #{tpu_custom_call.1} parent=1 // pred_check_branch
      %62 = sbr.rel (0) target = $region29
    $region28: #{tpu_custom_call.1} parent=1 // pred_region
      %64 = dma.done [#allocation9], 4096
    $region29: #{tpu_custom_call.1} parent=1 // pred_fallthru
      _
    // Predicated region
    $region30: #{tpu_custom_call.1} parent=1 // pred_check
      _
    $region31: #{tpu_custom_call.1} parent=1 // pred_check_branch
      %66 = sbr.rel (0) target = $region33
    $region32: #{tpu_custom_call.1} parent=1 // pred_region
      %68 = dma.done [#allocation12], 8192
    $region33: #{tpu_custom_call.1} parent=1 // pred_fallthru
      _
    loop: start=0, step=1, limit=8
    $region34: #{tpu_custom_call.1} parent=1 // loop_pre_header
      _
    $region35: #{tpu_custom_call.1} parent=1 // loop_header
      %s70 = sphi 0, %s74
      %p71 = scmp.ge.s32.totalorder %s70, 8
    $region36: #{tpu_custom_call.1} parent=1 // loop_header_branch
      %73 = sbr.rel (%p71) target = $region40
    $region37: #{tpu_custom_call.1} parent=1 // loop_body
      %s75 = sld [smem:[#allocation7 + %s70]]
      %s76 = scalar_lea.vmem %s1, %s75
      %v77 = vld [vmem:[%s76] sm:$0x1]
      %v78 = vunpack.c.l.bf16 %v77
      %s79 = scalar_lea.vmem [#allocation2], %s70
      %80 = vst [vmem:[%s79] sm:$0x1] %v78
    $region38: #{tpu_custom_call.1} parent=1 // loop_footer
      %s74 = sadd.s32 1, %s70
    $region39: #{tpu_custom_call.1} parent=1 // loop_footer_branch
      %69 = sbr.rel target = $region35
    $region40: #{tpu_custom_call.1} parent=1 // loop_exit
      _
    %v81 = vld [vmem:[#allocation2] sm:$0xff]
    %v82 = vpack.c.bf16 %v81, %v81
    %v83 = vld [vmem:[#allocation8] sm:$0xff]
    %v84 = vld [vmem:[#allocation8 + $0x8] sm:$0xff]
    %v85 = vld [vmem:[#allocation8 + $0x10] sm:$0xff]
    %v86 = vld [vmem:[#allocation8 + $0x18] sm:$0xff]
    %v87 = vld [vmem:[#allocation8 + $0x20] sm:$0xff]
    %v88 = vld [vmem:[#allocation8 + $0x28] sm:$0xff]
    %v89 = vld [vmem:[#allocation8 + $0x30] sm:$0xff]
    %v90 = vld [vmem:[#allocation8 + $0x38] sm:$0xff]
    %v91 = vld [vmem:[#allocation8 + $0x40] sm:$0xff]
    %v92 = vld [vmem:[#allocation8 + $0x48] sm:$0xff]
    %v93 = vld [vmem:[#allocation8 + $0x50] sm:$0xff]
    %v94 = vld [vmem:[#allocation8 + $0x58] sm:$0xff]
    %v95 = vld [vmem:[#allocation8 + $0x60] sm:$0xff]
    %v96 = vld [vmem:[#allocation8 + $0x68] sm:$0xff]
    %v97 = vld [vmem:[#allocation8 + $0x70] sm:$0xff]
    %v98 = vld [vmem:[#allocation8 + $0x78] sm:$0xff]
    %v99 = vld [vmem:[#allocation8 + $0x80] sm:$0xff]
    %v100 = vld [vmem:[#allocation8 + $0x88] sm:$0xff]
    %v101 = vld [vmem:[#allocation8 + $0x90] sm:$0xff]
    %v102 = vld [vmem:[#allocation8 + $0x98] sm:$0xff]
    %v103 = vld [vmem:[#allocation8 + $0xa0] sm:$0xff]
    %v104 = vld [vmem:[#allocation8 + $0xa8] sm:$0xff]
    %v105 = vld [vmem:[#allocation8 + $0xb0] sm:$0xff]
    %v106 = vld [vmem:[#allocation8 + $0xb8] sm:$0xff]
    %v107 = vld [vmem:[#allocation8 + $0xc0] sm:$0xff]
    %v108 = vld [vmem:[#allocation8 + $0xc8] sm:$0xff]
    %v109 = vld [vmem:[#allocation8 + $0xd0] sm:$0xff]
    %v110 = vld [vmem:[#allocation8 + $0xd8] sm:$0xff]
    %v111 = vld [vmem:[#allocation8 + $0xe0] sm:$0xff]
    %v112 = vld [vmem:[#allocation8 + $0xe8] sm:$0xff]
    %v113 = vld [vmem:[#allocation8 + $0xf0] sm:$0xff]
    %v114 = vld [vmem:[#allocation8 + $0xf8] sm:$0xff]
    %v115 = vld [vmem:[%s4] sm:$0xf]
    %v117 = vperm.slane %v115, 0
    %v118 = vperm.slane %v115, 1
    %v119 = vperm.slane %v115, 2
    %v120 = vperm.slane %v115, 3
    %v157 = vunpack.c.l.b16 %v83
    %v158 = vunpack.c.h.b16 %v83
    %v159 = vunpack.c.l.b16 %v84
    %v160 = vunpack.c.h.b16 %v84
    %v161 = vunpack.c.l.b16 %v85
    %v162 = vunpack.c.h.b16 %v85
    %v163 = vunpack.c.l.b16 %v86
    %v164 = vunpack.c.h.b16 %v86
    %v165 = vunpack.c.l.b16 %v87
    %v166 = vunpack.c.h.b16 %v87
    %v167 = vunpack.c.l.b16 %v88
    %v168 = vunpack.c.h.b16 %v88
    %v169 = vunpack.c.l.b16 %v89
    %v170 = vunpack.c.h.b16 %v89
    %v171 = vunpack.c.l.b16 %v90
    %v172 = vunpack.c.h.b16 %v90
    %v173 = vunpack.c.l.b16 %v91
    %v174 = vunpack.c.h.b16 %v91
    %v175 = vunpack.c.l.b16 %v92
    %v176 = vunpack.c.h.b16 %v92
    %v177 = vunpack.c.l.b16 %v93
    %v178 = vunpack.c.h.b16 %v93
    %v179 = vunpack.c.l.b16 %v94
    %v180 = vunpack.c.h.b16 %v94
    %v181 = vunpack.c.l.b16 %v95
    %v182 = vunpack.c.h.b16 %v95
    %v183 = vunpack.c.l.b16 %v96
    %v184 = vunpack.c.h.b16 %v96
    %v185 = vunpack.c.l.b16 %v97
    %v186 = vunpack.c.h.b16 %v97
    %v187 = vunpack.c.l.b16 %v98
    %v188 = vunpack.c.h.b16 %v98
    %v189 = vunpack.c.l.b16 %v99
    %v190 = vunpack.c.h.b16 %v99
    %v191 = vunpack.c.l.b16 %v100
    %v192 = vunpack.c.h.b16 %v100
    %v193 = vunpack.c.l.b16 %v101
    %v194 = vunpack.c.h.b16 %v101
    %v195 = vunpack.c.l.b16 %v102
    %v196 = vunpack.c.h.b16 %v102
    %v197 = vunpack.c.l.b16 %v103
    %v198 = vunpack.c.h.b16 %v103
    %v199 = vunpack.c.l.b16 %v104
    %v200 = vunpack.c.h.b16 %v104
    %v201 = vunpack.c.l.b16 %v105
    %v202 = vunpack.c.h.b16 %v105
    %v203 = vunpack.c.l.b16 %v106
    %v204 = vunpack.c.h.b16 %v106
    %v205 = vunpack.c.l.b16 %v107
    %v206 = vunpack.c.h.b16 %v107
    %v207 = vunpack.c.l.b16 %v108
    %v208 = vunpack.c.h.b16 %v108
    %v209 = vunpack.c.l.b16 %v109
    %v210 = vunpack.c.h.b16 %v109
    %v211 = vunpack.c.l.b16 %v110
    %v212 = vunpack.c.h.b16 %v110
    %v213 = vunpack.c.l.b16 %v111
    %v214 = vunpack.c.h.b16 %v111
    %v215 = vunpack.c.l.b16 %v112
    %v216 = vunpack.c.h.b16 %v112
    %v217 = vunpack.c.l.b16 %v113
    %v218 = vunpack.c.h.b16 %v113
    %v219 = vunpack.c.l.b16 %v114
    %v220 = vunpack.c.h.b16 %v114
    %v221 = vpack.c.b16 %v161, %v157
    %v222 = vpack.c.b16 %v162, %v158
    %v223 = vpack.c.b16 %v163, %v159
    %v224 = vpack.c.b16 %v164, %v160
    %v225 = vpack.c.b16 %v169, %v165
    %v226 = vpack.c.b16 %v170, %v166
    %v227 = vpack.c.b16 %v171, %v167
    %v228 = vpack.c.b16 %v172, %v168
    %v229 = vpack.c.b16 %v177, %v173
    %v230 = vpack.c.b16 %v178, %v174
    %v231 = vpack.c.b16 %v179, %v175
    %v232 = vpack.c.b16 %v180, %v176
    %v233 = vpack.c.b16 %v185, %v181
    %v234 = vpack.c.b16 %v186, %v182
    %v235 = vpack.c.b16 %v187, %v183
    %v236 = vpack.c.b16 %v188, %v184
    %v237 = vpack.c.b16 %v193, %v189
    %v238 = vpack.c.b16 %v194, %v190
    %v239 = vpack.c.b16 %v195, %v191
    %v240 = vpack.c.b16 %v196, %v192
    %v241 = vpack.c.b16 %v201, %v197
    %v242 = vpack.c.b16 %v202, %v198
    %v243 = vpack.c.b16 %v203, %v199
    %v244 = vpack.c.b16 %v204, %v200
    %v245 = vpack.c.b16 %v209, %v205
    %v246 = vpack.c.b16 %v210, %v206
    %v247 = vpack.c.b16 %v211, %v207
    %v248 = vpack.c.b16 %v212, %v208
    %v249 = vpack.c.b16 %v217, %v213
    %v250 = vpack.c.b16 %v218, %v214
    %v251 = vpack.c.b16 %v219, %v215
    %v252 = vpack.c.b16 %v220, %v216
    %285 = vmatpush.bf16.msra.mxu0 %v249
    %286 = vmatpush.bf16.msra.mxu0 %v245
    %287 = vmatpush.bf16.msra.mxu0 %v241
    %288 = vmatpush.bf16.msra.mxu0 %v237
    %289 = vmatpush.bf16.msra.mxu0 %v233
    %290 = vmatpush.bf16.msra.mxu0 %v229
    %291 = vmatpush.bf16.msra.mxu0 %v225
    %292 = vmatpush.bf16.msra.mxu0 %v221
    %293 = vmatmul.bf16.gmra.mxu0 %v82
    %v294 = vpop.f32.mrf.mxu0
    %v295 = vadd.f32 %v117, %v294
    %v296 = vpop.f32.mrf.mxu0
    %297 = vdwg.mxu0
    %298 = vmatpush.bf16.msra.mxu0 %v250
    %299 = vmatpush.bf16.msra.mxu0 %v246
    %300 = vmatpush.bf16.msra.mxu0 %v242
    %301 = vmatpush.bf16.msra.mxu0 %v238
    %302 = vmatpush.bf16.msra.mxu0 %v234
    %303 = vmatpush.bf16.msra.mxu0 %v230
    %304 = vmatpush.bf16.msra.mxu0 %v226
    %305 = vmatpush.bf16.msra.mxu0 %v222
    %306 = vmatmul.bf16.gmra.mxu0 %v82
    %v307 = vpop.f32.mrf.mxu0
    %v308 = vadd.f32 %v118, %v307
    %v309 = vpop.f32.mrf.mxu0
    %310 = vdwg.mxu0
    %311 = vmatpush.bf16.msra.mxu0 %v251
    %312 = vmatpush.bf16.msra.mxu0 %v247
    %313 = vmatpush.bf16.msra.mxu0 %v243
    %314 = vmatpush.bf16.msra.mxu0 %v239
    %315 = vmatpush.bf16.msra.mxu0 %v235
    %316 = vmatpush.bf16.msra.mxu0 %v231
    %317 = vmatpush.bf16.msra.mxu0 %v227
    %318 = vmatpush.bf16.msra.mxu0 %v223
    %319 = vmatmul.bf16.gmra.mxu0 %v82
    %v320 = vpop.f32.mrf.mxu0
    %v321 = vadd.f32 %v119, %v320
    %v322 = vpop.f32.mrf.mxu0
    %323 = vdwg.mxu0
    %324 = vmatpush.bf16.msra.mxu0 %v252
    %325 = vmatpush.bf16.msra.mxu0 %v248
    %326 = vmatpush.bf16.msra.mxu0 %v244
    %327 = vmatpush.bf16.msra.mxu0 %v240
    %328 = vmatpush.bf16.msra.mxu0 %v236
    %329 = vmatpush.bf16.msra.mxu0 %v232
    %330 = vmatpush.bf16.msra.mxu0 %v228
    %331 = vmatpush.bf16.msra.mxu0 %v224
    %332 = vmatmul.bf16.gmra.mxu0 %v82
    %v333 = vpop.f32.mrf.mxu0
    %v334 = vadd.f32 %v120, %v333
    %v335 = vpop.f32.mrf.mxu0
    %336 = vdwg.mxu0
    %337 = vst [vmem:[#allocation3] sm:$0xff] %v295
    %338 = vst [vmem:[#allocation3 + $0x8] sm:$0xff] %v308
    %339 = vst [vmem:[#allocation3 + $0x10] sm:$0xff] %v321
    %340 = vst [vmem:[#allocation3 + $0x18] sm:$0xff] %v334
    %v341 = vld [vmem:[%s5] sm:$0x1]
    %342 = vst [vmem:[#allocation4] sm:$0x1] %v341
    %v343 = vld [vmem:[%s6] sm:$0x1]
    %344 = vst [vmem:[#allocation5] sm:$0x1] %v343
    loop: start=0, step=1, limit=8
    $region41: #{tpu_custom_call.1} parent=1 // loop_pre_header
      _
    $region42: #{tpu_custom_call.1} parent=1 // loop_header
      %s346 = sphi 0, %s350
      %p347 = scmp.ge.s32.totalorder %s346, 8
    $region43: #{tpu_custom_call.1} parent=1 // loop_header_branch
      %349 = sbr.rel (%p347) target = $region47
    $region44: #{tpu_custom_call.1} parent=1 // loop_body
      %v351 = vld [vmem:[#allocation4] sm:$0x1]
      %v352 = vld [vmem:[#allocation5] sm:$0x1]
      %s353 = sshra.s32 %s346, 3
      %s354 = sand.u32 %s346, 7
      %s355 = sshra.s32 %s346, 3
      %s356 = sand.u32 %s346, 7
      %s357 = smul.u32 %s353, 4
      %s358 = smul.u32 %s357, 8
      %s359 = sadd.s32 %s358, %s356
      %s360 = scalar_lea.vmem [#allocation3], %s359
      %v361 = vld [vmem:[%s360] ss:$8 sm:$0xf]
      %v362 = vld [vmem:[#allocation11] sm:$0xff]
      %v363 = vld [vmem:[#allocation11 + $0x8] sm:$0xff]
      %v364 = vld [vmem:[#allocation11 + $0x10] sm:$0xff]
      %v365 = vld [vmem:[#allocation11 + $0x18] sm:$0xff]
      %v366 = vld [vmem:[#allocation11 + $0x20] sm:$0xff]
      %v367 = vld [vmem:[#allocation11 + $0x28] sm:$0xff]
      %v368 = vld [vmem:[#allocation11 + $0x30] sm:$0xff]
      %v369 = vld [vmem:[#allocation11 + $0x38] sm:$0xff]
      %v370 = vld [vmem:[#allocation11 + $0x40] sm:$0xff]
      %v371 = vld [vmem:[#allocation11 + $0x48] sm:$0xff]
      %v372 = vld [vmem:[#allocation11 + $0x50] sm:$0xff]
      %v373 = vld [vmem:[#allocation11 + $0x58] sm:$0xff]
      %v374 = vld [vmem:[#allocation11 + $0x60] sm:$0xff]
      %v375 = vld [vmem:[#allocation11 + $0x68] sm:$0xff]
      %v376 = vld [vmem:[#allocation11 + $0x70] sm:$0xff]
      %v377 = vld [vmem:[#allocation11 + $0x78] sm:$0xff]
      %v378 = vld [vmem:[#allocation11 + $0x80] sm:$0xff]
      %v379 = vld [vmem:[#allocation11 + $0x88] sm:$0xff]
      %v380 = vld [vmem:[#allocation11 + $0x90] sm:$0xff]
      %v381 = vld [vmem:[#allocation11 + $0x98] sm:$0xff]
      %v382 = vld [vmem:[#allocation11 + $0xa0] sm:$0xff]
      %v383 = vld [vmem:[#allocation11 + $0xa8] sm:$0xff]
      %v384 = vld [vmem:[#allocation11 + $0xb0] sm:$0xff]
      %v385 = vld [vmem:[#allocation11 + $0xb8] sm:$0xff]
      %v386 = vld [vmem:[#allocation11 + $0xc0] sm:$0xff]
      %v387 = vld [vmem:[#allocation11 + $0xc8] sm:$0xff]
      %v388 = vld [vmem:[#allocation11 + $0xd0] sm:$0xff]
      %v389 = vld [vmem:[#allocation11 + $0xd8] sm:$0xff]
      %v390 = vld [vmem:[#allocation11 + $0xe0] sm:$0xff]
      %v391 = vld [vmem:[#allocation11 + $0xe8] sm:$0xff]
      %v392 = vld [vmem:[#allocation11 + $0xf0] sm:$0xff]
      %v393 = vld [vmem:[#allocation11 + $0xf8] sm:$0xff]
      %v394 = vld [vmem:[#allocation11 + $0x100] sm:$0xff]
      %v395 = vld [vmem:[#allocation11 + $0x108] sm:$0xff]
      %v396 = vld [vmem:[#allocation11 + $0x110] sm:$0xff]
      %v397 = vld [vmem:[#allocation11 + $0x118] sm:$0xff]
      %v398 = vld [vmem:[#allocation11 + $0x120] sm:$0xff]
      %v399 = vld [vmem:[#allocation11 + $0x128] sm:$0xff]
      %v400 = vld [vmem:[#allocation11 + $0x130] sm:$0xff]
      %v401 = vld [vmem:[#allocation11 + $0x138] sm:$0xff]
      %v402 = vld [vmem:[#allocation11 + $0x140] sm:$0xff]
      %v403 = vld [vmem:[#allocation11 + $0x148] sm:$0xff]
      %v404 = vld [vmem:[#allocation11 + $0x150] sm:$0xff]
      %v405 = vld [vmem:[#allocation11 + $0x158] sm:$0xff]
      %v406 = vld [vmem:[#allocation11 + $0x160] sm:$0xff]
      %v407 = vld [vmem:[#allocation11 + $0x168] sm:$0xff]
      %v408 = vld [vmem:[#allocation11 + $0x170] sm:$0xff]
      %v409 = vld [vmem:[#allocation11 + $0x178] sm:$0xff]
      %v410 = vld [vmem:[#allocation11 + $0x180] sm:$0xff]
      %v411 = vld [vmem:[#allocation11 + $0x188] sm:$0xff]
      %v412 = vld [vmem:[#allocation11 + $0x190] sm:$0xff]
      %v413 = vld [vmem:[#allocation11 + $0x198] sm:$0xff]
      %v414 = vld [vmem:[#allocation11 + $0x1a0] sm:$0xff]
      %v415 = vld [vmem:[#allocation11 + $0x1a8] sm:$0xff]
      %v416 = vld [vmem:[#allocation11 + $0x1b0] sm:$0xff]
      %v417 = vld [vmem:[#allocation11 + $0x1b8] sm:$0xff]
      %v418 = vld [vmem:[#allocation11 + $0x1c0] sm:$0xff]
      %v419 = vld [vmem:[#allocation11 + $0x1c8] sm:$0xff]
      %v420 = vld [vmem:[#allocation11 + $0x1d0] sm:$0xff]
      %v421 = vld [vmem:[#allocation11 + $0x1d8] sm:$0xff]
      %v422 = vld [vmem:[#allocation11 + $0x1e0] sm:$0xff]
      %v423 = vld [vmem:[#allocation11 + $0x1e8] sm:$0xff]
      %v424 = vld [vmem:[#allocation11 + $0x1f0] sm:$0xff]
      %v425 = vld [vmem:[#allocation11 + $0x1f8] sm:$0xff]
      %426 = vmatpush.msra.mxu0 %v422
      %427 = vmatpush.msra.mxu0 %v418
      %428 = vmatpush.msra.mxu0 %v414
      %429 = vmatpush.msra.mxu0 %v410
      %430 = vmatpush.msra.mxu0 %v406
      %431 = vmatpush.msra.mxu0 %v402
      %432 = vmatpush.msra.mxu0 %v398
      %433 = vmatpush.msra.mxu0 %v394
      %434 = vmatpush.msra.mxu0 %v390
      %435 = vmatpush.msra.mxu0 %v386
      %436 = vmatpush.msra.mxu0 %v382
      %437 = vmatpush.msra.mxu0 %v378
      %438 = vmatpush.msra.mxu0 %v374
      %439 = vmatpush.msra.mxu0 %v370
      %440 = vmatpush.msra.mxu0 %v366
      %441 = vmatpush.msra.mxu0 %v362
      %442 = vmatmul.f32.gmra.mxu0 %v351
      %v443 = vpop.f32.mrf.mxu0
      %v444 = vadd.f32 0.0, %v443
      %445 = vdwg.mxu0
      %446 = vmatpush.msra.mxu0 %v423
      %447 = vmatpush.msra.mxu0 %v419
      %448 = vmatpush.msra.mxu0 %v415
      %449 = vmatpush.msra.mxu0 %v411
      %450 = vmatpush.msra.mxu0 %v407
      %451 = vmatpush.msra.mxu0 %v403
      %452 = vmatpush.msra.mxu0 %v399
      %453 = vmatpush.msra.mxu0 %v395
      %454 = vmatpush.msra.mxu0 %v391
      %455 = vmatpush.msra.mxu0 %v387
      %456 = vmatpush.msra.mxu0 %v383
      %457 = vmatpush.msra.mxu0 %v379
      %458 = vmatpush.msra.mxu0 %v375
      %459 = vmatpush.msra.mxu0 %v371
      %460 = vmatpush.msra.mxu0 %v367
      %461 = vmatpush.msra.mxu0 %v363
      %462 = vmatmul.f32.gmra.mxu0 %v351
      %v463 = vpop.f32.mrf.mxu0
      %v464 = vadd.f32 0.0, %v463
      %465 = vdwg.mxu0
      %466 = vmatpush.msra.mxu0 %v424
      %467 = vmatpush.msra.mxu0 %v420
      %468 = vmatpush.msra.mxu0 %v416
      %469 = vmatpush.msra.mxu0 %v412
      %470 = vmatpush.msra.mxu0 %v408
      %471 = vmatpush.msra.mxu0 %v404
      %472 = vmatpush.msra.mxu0 %v400
      %473 = vmatpush.msra.mxu0 %v396
      %474 = vmatpush.msra.mxu0 %v392
      %475 = vmatpush.msra.mxu0 %v388
      %476 = vmatpush.msra.mxu0 %v384
      %477 = vmatpush.msra.mxu0 %v380
      %478 = vmatpush.msra.mxu0 %v376
      %479 = vmatpush.msra.mxu0 %v372
      %480 = vmatpush.msra.mxu0 %v368
      %481 = vmatpush.msra.mxu0 %v364
      %482 = vmatmul.f32.gmra.mxu0 %v351
      %v483 = vpop.f32.mrf.mxu0
      %v484 = vadd.f32 0.0, %v483
      %485 = vdwg.mxu0
      %486 = vmatpush.msra.mxu0 %v425
      %487 = vmatpush.msra.mxu0 %v421
      %488 = vmatpush.msra.mxu0 %v417
      %489 = vmatpush.msra.mxu0 %v413
      %490 = vmatpush.msra.mxu0 %v409
      %491 = vmatpush.msra.mxu0 %v405
      %492 = vmatpush.msra.mxu0 %v401
      %493 = vmatpush.msra.mxu0 %v397
      %494 = vmatpush.msra.mxu0 %v393
      %495 = vmatpush.msra.mxu0 %v389
      %496 = vmatpush.msra.mxu0 %v385
      %497 = vmatpush.msra.mxu0 %v381
      %498 = vmatpush.msra.mxu0 %v377
      %499 = vmatpush.msra.mxu0 %v373
      %500 = vmatpush.msra.mxu0 %v369
      %501 = vmatpush.msra.mxu0 %v365
      %502 = vmatmul.f32.gmra.mxu0 %v351
      %v503 = vpop.f32.mrf.mxu0
      %v504 = vadd.f32 0.0, %v503
      %505 = vdwg.mxu0
      %v510 = vrot.slane %v464, 7
      %v511 = vrot.slane %v484, 6
      %v512 = vrot.slane %v504, 5
      %vm513 = vcmask 1040384
      %v514 = vsel %vm513, %v444, %v510
      %vm515 = vcmask 1042434
      %v516 = vsel %vm515, %v511, %v512
      %vm517 = vcmask 1041408
      %v518 = vsel %vm517, %v514, %v516
      %v520 = vadd.f32 %v361, %v518
      %v521 = vxor.u32 %v520, 2147483648
      %v522 = vmul.f32 %v521, 1.442695
      %v523 = vpow.pop %v522
      %v524 = vadd.f32 %v523, 1.0
      %v525 = vrcp.pop %v524
      %v526 = vmul.f32 %v524, %v525
      %v527 = vsub.f32 1.0, %v526
      %v528 = vmul.f32 %v525, %v527
      %v529 = vadd.f32 %v525, %v528
      %vm530 = vweird.f32 %v524
      %vm531 = vweird.f32 %v525
      %vm532 = vmor %vm530, %vm531
      %v533 = vsel %vm532, %v525, %v529
      %v534 = vand.u32 2147483647, %v524
      %vm535 = vcmp.eq.f32.partialorder %v534, 8.507059e+37
      %v536 = vand.u32 %v524, 2147483648
      %v537 = vor.u32 1.1754944e-38, %v536
      %v538 = vsel %vm535, %v537, %v533
      %v539 = vmul.f32 1.0, %v538
      %v541 = vrot.slane %v520, 1
      %v543 = vxor.u32 %v541, 2147483648
      %v544 = vmul.f32 %v543, 1.442695
      %v545 = vpow.pop %v544
      %v546 = vadd.f32 %v545, 1.0
      %v547 = vrcp.pop %v546
      %v548 = vmul.f32 %v546, %v547
      %v549 = vsub.f32 1.0, %v548
      %v550 = vmul.f32 %v547, %v549
      %v551 = vadd.f32 %v547, %v550
      %vm552 = vweird.f32 %v546
      %vm553 = vweird.f32 %v547
      %vm554 = vmor %vm552, %vm553
      %v555 = vsel %vm554, %v547, %v551
      %v556 = vand.u32 2147483647, %v546
      %vm557 = vcmp.eq.f32.partialorder %v556, 8.507059e+37
      %v558 = vand.u32 %v546, 2147483648
      %v559 = vor.u32 1.1754944e-38, %v558
      %v560 = vsel %vm557, %v559, %v555
      %v561 = vmul.f32 1.0, %v560
      %v562 = vrot.slane %v520, 2
      %v564 = vtanh.pop %v562
      %v565 = vrot.slane %v520, 3
      %v567 = vxor.u32 %v565, 2147483648
      %v568 = vmul.f32 %v567, 1.442695
      %v569 = vpow.pop %v568
      %v570 = vadd.f32 %v569, 1.0
      %v571 = vrcp.pop %v570
      %v572 = vmul.f32 %v570, %v571
      %v573 = vsub.f32 1.0, %v572
      %v574 = vmul.f32 %v571, %v573
      %v575 = vadd.f32 %v571, %v574
      %vm576 = vweird.f32 %v570
      %vm577 = vweird.f32 %v571
      %vm578 = vmor %vm576, %vm577
      %v579 = vsel %vm578, %v571, %v575
      %v580 = vand.u32 2147483647, %v570
      %vm581 = vcmp.eq.f32.partialorder %v580, 8.507059e+37
      %v582 = vand.u32 %v570, 2147483648
      %v583 = vor.u32 1.1754944e-38, %v582
      %v584 = vsel %vm581, %v583, %v579
      %v585 = vmul.f32 1.0, %v584
      %v586 = vmul.f32 %v561, %v352
      %v587 = vmul.f32 %v539, %v564
      %v588 = vadd.f32 %v586, %v587
      %v589 = vtanh.pop %v588
      %v590 = vmul.f32 %v585, %v589
      %591 = vst [vmem:[#allocation4] sm:$0x1] %v590
      %592 = vst [vmem:[#allocation5] sm:$0x1] %v588
      %s593 = scalar_lea.vmem [#allocation13], %s346
      %594 = vst [vmem:[%s593] sm:$0x1] %v590
    $region45: #{tpu_custom_call.1} parent=1 // loop_footer
      %s350 = sadd.s32 1, %s346
    $region46: #{tpu_custom_call.1} parent=1 // loop_footer_branch
      %345 = sbr.rel target = $region42
    $region47: #{tpu_custom_call.1} parent=1 // loop_exit
      _
    %v595 = vld [vmem:[#allocation4] sm:$0x1]
    %596 = vst [vmem:[#allocation14] sm:$0x1] %v595
    %v597 = vld [vmem:[#allocation5] sm:$0x1]
    %598 = vst [vmem:[#allocation16] sm:$0x1] %v597
    // Predicated region
    $region48: #{tpu_custom_call.1} parent=1 // pred_check
      _
    $region49: #{tpu_custom_call.1} parent=1 // pred_check_branch
      %600 = sbr.rel (0) target = $region51
    $region50: #{tpu_custom_call.1} parent=1 // pred_region
      %602 = vsyncadd [#allocation10], 0
      %s604 = sshll.u32 [#allocation13], 4
      %s605 = int_to_ptr.vmem [resolvable:$true] %s604
      %s606 = sshll.u32 %s7, 4
      %s607 = int_to_ptr.hbm [resolvable:$true] %s606
      %609 = dma.vmem_to_hbm [thread:$0]  %s605, 128, %s607, [#allocation10]
    $region51: #{tpu_custom_call.1} parent=1 // pred_fallthru
      _
    // Predicated region
    $region52: #{tpu_custom_call.1} parent=1 // pred_check
      _
    $region53: #{tpu_custom_call.1} parent=1 // pred_check_branch
      %611 = sbr.rel (0) target = $region55
    $region54: #{tpu_custom_call.1} parent=1 // pred_region
      %613 = vsyncadd [#allocation15], 0
      %s615 = sshll.u32 [#allocation14], 4
      %s616 = int_to_ptr.vmem [resolvable:$true] %s615
      %s617 = sshll.u32 %s8, 4
      %s618 = int_to_ptr.hbm [resolvable:$true] %s617
      %620 = dma.vmem_to_hbm [thread:$0]  %s616, 16, %s618, [#allocation15]
    $region55: #{tpu_custom_call.1} parent=1 // pred_fallthru
      _
    // Predicated region
    $region56: #{tpu_custom_call.1} parent=1 // pred_check
      _
    $region57: #{tpu_custom_call.1} parent=1 // pred_check_branch
      %622 = sbr.rel (0) target = $region59
    $region58: #{tpu_custom_call.1} parent=1 // pred_region
      %624 = vsyncadd [#allocation15], 0
      %s626 = sshll.u32 [#allocation16], 4
      %s627 = int_to_ptr.vmem [resolvable:$true] %s626
      %s628 = sshll.u32 %s9, 4
      %s629 = int_to_ptr.hbm [resolvable:$true] %s628
      %631 = dma.vmem_to_hbm [thread:$0]  %s627, 16, %s629, [#allocation15]
    $region59: #{tpu_custom_call.1} parent=1 // pred_fallthru
      _
    // Predicated region
    $region60: #{tpu_custom_call.1} parent=1 // pred_check
      _
    $region61: #{tpu_custom_call.1} parent=1 // pred_check_branch
      %633 = sbr.rel (0) target = $region63
    $region62: #{tpu_custom_call.1} parent=1 // pred_region
      %635 = dma.done [#allocation10], 128
    $region63: #{tpu_custom_call.1} parent=1 // pred_fallthru
      _
    // Predicated region
    $region64: #{tpu_custom_call.1} parent=1 // pred_check
      _
    $region65: #{tpu_custom_call.1} parent=1 // pred_check_branch
      %637 = sbr.rel (0) target = $region67
    $region66: #{tpu_custom_call.1} parent=1 // pred_region
      %639 = dma.done [#allocation15], 16
    $region67: #{tpu_custom_call.1} parent=1 // pred_fallthru
      _
    // Predicated region
    $region68: #{tpu_custom_call.1} parent=1 // pred_check
      _
    $region69: #{tpu_custom_call.1} parent=1 // pred_check_branch
      %641 = sbr.rel (0) target = $region71
    $region70: #{tpu_custom_call.1} parent=1 // pred_region
      %643 = dma.done [#allocation15], 16
    $region71: #{tpu_custom_call.1} parent=1 // pred_fallthru
      _
    %644 = vsyncpa [#allocation9], 1
    %645 = vsyncpa [#allocation12], 1
    %646 = vsyncpa [#allocation10], 1
    %647 = vsyncpa [#allocation15], 1

</llo_original>
